<compile_context>
chip_gen: v5e
topology: v5e:2x2
jax: 0.10.0
libtpu: 0.0.40
codegen_flags: <defaults>
</compile_context>

<pallas_src>
import functools
import math

import jax
import jax.numpy as jnp
from jax.experimental import pallas as pl
from jax.experimental.pallas import tpu as pltpu


def _round_up(x, m):
    return ((x + m - 1) // m) * m


# ----------------------- Kernel 1: multi-head self-attention ----------------------- #

def _mha_kernel(x_ref, wq_ref, wk_ref, wv_ref, bq_ref, bk_ref, bv_ref,
                wo_ref, bo_ref, o_ref, *, nhead):
    x = x_ref[...]                                                       # (L, D) f32
    q = jnp.dot(x, wq_ref[...], preferred_element_type=jnp.float32) + bq_ref[...]
    k = jnp.dot(x, wk_ref[...], preferred_element_type=jnp.float32) + bk_ref[...]
    v = jnp.dot(x, wv_ref[...], preferred_element_type=jnp.float32) + bv_ref[...]

    L, D = x.shape
    hd = D // nhead
    scale = 1.0 / math.sqrt(hd)

    acc = jnp.zeros((L, D), jnp.float32)
    for h in range(nhead):                                               # static unroll, nhead small
        lo, hi = h * hd, (h + 1) * hd
        qh, kh, vh = q[:, lo:hi], k[:, lo:hi], v[:, lo:hi]
        s = jax.lax.dot_general(qh, kh, (((1,), (1,)), ((), ())),
                                preferred_element_type=jnp.float32) * scale   # (L, L)
        s = s - jnp.max(s, axis=-1, keepdims=True)
        p = jnp.exp(s)
        p = p * pl.reciprocal(jnp.sum(p, axis=-1, keepdims=True), approx=True)
        oh = jnp.dot(p, vh, preferred_element_type=jnp.float32)              # (L, hd)
        # fold the output projection per head: avoids a lane concatenate
        acc = acc + jnp.dot(oh, wo_ref[lo:hi, :], preferred_element_type=jnp.float32)
    o_ref[...] = (acc + bo_ref[...]).astype(o_ref.dtype)


def mha_pallas(x, wq, wk, wv, bq, bk, bv, wo, bo, *, nhead):
    B, L, D = x.shape
    return pl.pallas_call(
        functools.partial(_mha_kernel, nhead=nhead),
        out_shape=jax.ShapeDtypeStruct((B, L, D), x.dtype),
        grid_spec=pltpu.PrefetchScalarGridSpec(
            num_scalar_prefetch=0,
            grid=(B,),
            in_specs=[
                pl.BlockSpec((None, L, D), lambda b: (b, 0, 0)),   # x  (batch-squeezed)
                pl.BlockSpec((D, D), lambda b: (0, 0)),            # Wq
                pl.BlockSpec((D, D), lambda b: (0, 0)),            # Wk
                pl.BlockSpec((D, D), lambda b: (0, 0)),            # Wv
                pl.BlockSpec((1, D), lambda b: (0, 0)),            # bq
                pl.BlockSpec((1, D), lambda b: (0, 0)),            # bk
                pl.BlockSpec((1, D), lambda b: (0, 0)),            # bv
                pl.BlockSpec((D, D), lambda b: (0, 0)),            # Wo
                pl.BlockSpec((1, D), lambda b: (0, 0)),            # bo
            ],
            out_specs=pl.BlockSpec((None, L, D), lambda b: (b, 0, 0)),
        ),
        compiler_params=pltpu.CompilerParams(dimension_semantics=("parallel",)),
    )(x, wq, wk, wv, bq, bk, bv, wo, bo)


# --------------- Kernel 2: fused norm1 + gate + top-k + experts + norm2 --------------- #

def _moe_block_kernel(x_ref, a_ref, u_ref,
                      wg1_ref, bg1_ref, wg2_ref, bg2_ref,
                      w1_ref, b1_ref, w2_ref, b2_ref,
                      ln1g_ref, ln1b_ref, ln2g_ref, ln2b_ref,
                      y_ref, gs_ref, em_ref,
                      *, tau, num_experts, top_k, hidden_dim, eps):
    E, H = num_experts, hidden_dim

    # residual + LayerNorm1 (per token, f32 on the VPU)
    r = x_ref[...] + a_ref[...]                                          # (tm, D)
    mu = jnp.mean(r, axis=-1, keepdims=True)
    rc = r - mu
    var = jnp.mean(rc * rc, axis=-1, keepdims=True)
    h = rc * jax.lax.rsqrt(var + eps) * ln1g_ref[...] + ln1b_ref[...]
    hb = h.astype(jnp.bfloat16)                                          # MXU inputs in bf16

    # ---- gate: Linear(D,D) -> ReLU -> Linear(D,E), gumbel-softmax ----
    g = jnp.dot(hb, wg1_ref[...], preferred_element_type=jnp.float32) + bg1_ref[...]
    g = jnp.maximum(g, 0.0)
    logits = jnp.dot(g.astype(jnp.bfloat16), wg2_ref[...],
                     preferred_element_type=jnp.float32) + bg2_ref[...]
    gum = -jnp.log(-jnp.log(u_ref[...] + 1e-9) + 1e-9)                   # pre-sampled uniforms
    z = (logits + gum) * (1.0 / tau)
    z = z - jnp.max(z, axis=-1, keepdims=True)                           # stable softmax
    ez = jnp.exp(z)
    scores = ez * pl.reciprocal(jnp.sum(ez, axis=-1, keepdims=True), approx=True)
    gs_ref[...] = scores
    # TODO(synk): `hard=True` straight-through one-hot path of LinearGating not implemented
    # (module default is hard=False).

    # ---- in-kernel top-k (E, k tiny): iteratively select first argmax ----
    lane = jax.lax.broadcasted_iota(jnp.int32, scores.shape, 1)          # (tm, E)
    remaining = scores
    cw = jnp.zeros_like(scores)
    msk = jnp.zeros_like(scores)
    for _ in range(top_k):
        m = jnp.max(remaining, axis=-1, keepdims=True)
        idx = jnp.min(jnp.where(remaining == m, lane, E), axis=-1, keepdims=True)
        oh = (lane == idx).astype(jnp.float32)
        cw = cw + oh * m                                                 # combine weights
        msk = msk + oh                                                   # expert mask
        remaining = jnp.where(oh > 0.0, -jnp.inf, remaining)
    em_ref[...] = msk

    # ---- experts fused into two wide matmuls over the concatenated hidden dim ----
    hall = jnp.dot(hb, w1_ref[...], preferred_element_type=jnp.float32) + b1_ref[...]
    hall = jnp.maximum(hall, 0.0)                                        # (tm, E*H)
    # broadcast cw over each expert's H block via a single tiny matmul (no per-expert loop)
    row = jax.lax.broadcasted_iota(jnp.int32, (E, E * H), 0)
    col = jax.lax.broadcasted_iota(jnp.int32, (E, E * H), 1)
    rep = (col // H == row).astype(jnp.float32)                          # (E, E*H) block one-hot
    hall = hall * jnp.dot(cw, rep, preferred_element_type=jnp.float32)
    moe = jnp.dot(hall.astype(jnp.bfloat16), w2_ref[...],
                  preferred_element_type=jnp.float32)                    # (tm, D)
    moe = moe + jnp.dot(cw, b2_ref[...], preferred_element_type=jnp.float32)  # weighted 2nd bias

    # ---- residual + LayerNorm2 ----
    y = h + moe
    mu2 = jnp.mean(y, axis=-1, keepdims=True)
    yc = y - mu2
    var2 = jnp.mean(yc * yc, axis=-1, keepdims=True)
    y_ref[...] = (yc * jax.lax.rsqrt(var2 + eps) * ln2g_ref[...] + ln2b_ref[...]).astype(y_ref.dtype)


def moe_layer_pallas(x_flat, attn_flat, u, params, *, num_experts, top_k, tau,
                     hidden_dim, tile_tokens=512, eps=1e-5):
    T, D = x_flat.shape
    E = num_experts
    EH = num_experts * hidden_dim

    # Large lane-dense token tiles (default 512); pad T so no remainder tile is dropped.
    tile = min(tile_tokens, _round_up(T, 8))
    t_pad = _round_up(T, tile)
    if t_pad != T:
        pad = t_pad - T
        x_flat = jnp.pad(x_flat, ((0, pad), (0, 0)))
        attn_flat = jnp.pad(attn_flat, ((0, pad), (0, 0)))
        u = jnp.pad(u, ((0, pad), (0, 0)), constant_values=0.5)

    # bf16 weights for the MXU (halves weight DMA); biases / LN params stay f32.
    wg1 = params["wg1"].astype(jnp.bfloat16)
    wg2 = params["wg2"].astype(jnp.bfloat16)
    w1f = params["w1"].transpose(1, 0, 2).reshape(D, EH).astype(jnp.bfloat16)   # (D, E*H)
    b1f = params["b1"].reshape(1, EH)                                           # (1, E*H)
    w2f = params["w2"].reshape(EH, D).astype(jnp.bfloat16)                      # (E*H, D)
    b2f = params["b2"].reshape(E, D)                                            # (E, D)

    # TODO(synk): at production sizes (D>=1024, H>=4096, E>=8) the resident fused expert
    # weights exceed v7x's 64 MiB VMEM; add an expert/H grid axis with pl.when init/finalize
    # accumulation and an explicit vmem_limit_bytes instead of keeping them resident.
    kernel = functools.partial(
        _moe_block_kernel, tau=tau, num_experts=E, top_k=top_k,
        hidden_dim=hidden_dim, eps=eps)

    y, gs, em = pl.pallas_call(
        kernel,
        out_shape=(
            jax.ShapeDtypeStruct((t_pad, D), jnp.float32),
            jax.ShapeDtypeStruct((t_pad, E), jnp.float32),
            jax.ShapeDtypeStruct((t_pad, E), jnp.float32),
        ),
        grid_spec=pltpu.PrefetchScalarGridSpec(
            num_scalar_prefetch=0,
            grid=(t_pad // tile,),
            in_specs=[
                pl.BlockSpec((tile, D), lambda i: (i, 0)),    # x tile (layer input)
                pl.BlockSpec((tile, D), lambda i: (i, 0)),    # attention output tile
                pl.BlockSpec((tile, E), lambda i: (i, 0)),    # gumbel uniforms
                pl.BlockSpec((D, D), lambda i: (0, 0)),       # gate W1
                pl.BlockSpec((1, D), lambda i: (0, 0)),       # gate b1
                pl.BlockSpec((D, E), lambda i: (0, 0)),       # gate W2
                pl.BlockSpec((1, E), lambda i: (0, 0)),       # gate b2
                pl.BlockSpec((D, EH), lambda i: (0, 0)),      # experts W1 fused
                pl.BlockSpec((1, EH), lambda i: (0, 0)),      # experts b1 fused
                pl.BlockSpec((EH, D), lambda i: (0, 0)),      # experts W2 fused
                pl.BlockSpec((E, D), lambda i: (0, 0)),       # experts b2
                pl.BlockSpec((1, D), lambda i: (0, 0)),       # LN1 gamma
                pl.BlockSpec((1, D), lambda i: (0, 0)),       # LN1 beta
                pl.BlockSpec((1, D), lambda i: (0, 0)),       # LN2 gamma
                pl.BlockSpec((1, D), lambda i: (0, 0)),       # LN2 beta
            ],
            out_specs=(
                pl.BlockSpec((tile, D), lambda i: (i, 0)),
                pl.BlockSpec((tile, E), lambda i: (i, 0)),
                pl.BlockSpec((tile, E), lambda i: (i, 0)),
            ),
        ),
        compiler_params=pltpu.CompilerParams(dimension_semantics=("parallel",)),
    )(x_flat, attn_flat, u,
      wg1, params["bg1"], wg2, params["bg2"],
      w1f, b1f, w2f, b2f,
      params["ln1_g"], params["ln1_b"], params["ln2_g"], params["ln2_b"])

    return y[:T], gs[:T], em[:T]


# --------------------------------- full layer forward --------------------------------- #

def moe_encoder_layer_forward(x, params, *, nhead, num_experts, top_k, tau,
                              hidden_dim, noise_key, tile_tokens=512):
    """Returns (out (B,L,D), gate_scores (T,E), expert_mask (T,E)) like the PyTorch module."""
    B, L, D = x.shape
    T = B * L

    attn = mha_pallas(x, params["wq"], params["wk"], params["wv"],
                      params["bq"], params["bk"], params["bv"],
                      params["wo"], params["bo"], nhead=nhead)           # (B, L, D)

    u = jax.random.uniform(noise_key, (T, num_experts), dtype=jnp.float32)
    y, gate_scores, expert_mask = moe_layer_pallas(
        x.reshape(T, D), attn.reshape(T, D), u, params,
        num_experts=num_experts, top_k=top_k, tau=tau,
        hidden_dim=hidden_dim, tile_tokens=tile_tokens)
    return y.reshape(B, L, D), gate_scores, expert_mask


# -------------------------------------- params --------------------------------------- #

def init_params(key, d_model, hidden_dim, num_experts):
    ks = jax.random.split(key, 16)
    s = 0.05
    D, H, E = d_model, hidden_dim, num_experts
    return {
        # self-attention (right-multiply layout: y = x @ W + b)
        "wq": s * jax.random.normal(ks[0], (D, D), jnp.float32),
        "wk": s * jax.random.normal(ks[1], (D, D), jnp.float32),
        "wv": s * jax.random.normal(ks[2], (D, D), jnp.float32),
        "bq": jnp.zeros((1, D), jnp.float32),
        "bk": jnp.zeros((1, D), jnp.float32),
        "bv": jnp.zeros((1, D), jnp.float32),
        "wo": s * jax.random.normal(ks[3], (D, D), jnp.float32),
        "bo": jnp.zeros((1, D), jnp.float32),
        # LayerNorms (PyTorch default init)
        "ln1_g": jnp.ones((1, D), jnp.float32), "ln1_b": jnp.zeros((1, D), jnp.float32),
        "ln2_g": jnp.ones((1, D), jnp.float32), "ln2_b": jnp.zeros((1, D), jnp.float32),
        # gate: Linear(D,D) -> ReLU -> Linear(D,E)
        "wg1": s * jax.random.normal(ks[4], (D, D), jnp.float32),
        "bg1": s * jax.random.normal(ks[5], (1, D), jnp.float32),
        "wg2": s * jax.random.normal(ks[6], (D, E), jnp.float32),
        "bg2": s * jax.random.normal(ks[7], (1, E), jnp.float32),
        # experts: Linear(D,H) -> ReLU -> Linear(H,D), stacked over E
        "w1": s * jax.random.normal(ks[8], (E, D, H), jnp.float32),
        "b1": s * jax.random.normal(ks[9], (E, 1, H), jnp.float32),
        "w2": s * jax.random.normal(ks[10], (E, H, D), jnp.float32),
        "b2": s * jax.random.normal(ks[11], (E, 1, D), jnp.float32),
    }


# --------------------------------------- main ----------------------------------------- #

if __name__ == "__main__":
    B, L, D_MODEL, NHEAD, FFN = 2, 8, 32, 4, 64
    NUM_EXPERTS, TOP_K, TAU = 4, 2, 1.0

    root = jax.random.PRNGKey(0)
    k_param, k_x, k_noise = jax.random.split(root, 3)

    params = init_params(k_param, D_MODEL, FFN, NUM_EXPERTS)
    x = jax.random.normal(k_x, (B, L, D_MODEL), jnp.float32)

    out, gate_scores, expert_mask = moe_encoder_layer_forward(
        x, params, nhead=NHEAD, num_experts=NUM_EXPERTS, top_k=TOP_K, tau=TAU,
        hidden_dim=FFN, noise_key=k_noise, tile_tokens=512)

    jax.block_until_ready((out, gate_scores, expert_mask))

    T = B * L
    assert out.shape == (B, L, D_MODEL)
    assert gate_scores.shape == (T, NUM_EXPERTS)
    assert expert_mask.shape == (T, NUM_EXPERTS)
    assert bool(jnp.all(jnp.isfinite(out)))
    # each token routes to exactly top_k experts; gate scores are a (approx) softmax
    assert bool(jnp.all(jnp.sum(expert_mask, axis=-1) == TOP_K))
    assert bool(jnp.all(jnp.abs(jnp.sum(gate_scores, axis=-1) - 1.0) < 1e-2))

    print("KERNEL_OK")
</pallas_src>

<mosaic_0001>
module attributes {stable_mosaic.version = 11 : i64} {
  func.func @_mha_kernel(%arg0: i32, %arg1: memref<1x8x32xf32, #tpu.memory_space<vmem>>, %arg2: memref<32x32xf32, #tpu.memory_space<vmem>>, %arg3: memref<32x32xf32, #tpu.memory_space<vmem>>, %arg4: memref<32x32xf32, #tpu.memory_space<vmem>>, %arg5: memref<1x32xf32, #tpu.memory_space<vmem>>, %arg6: memref<1x32xf32, #tpu.memory_space<vmem>>, %arg7: memref<1x32xf32, #tpu.memory_space<vmem>>, %arg8: memref<32x32xf32, #tpu.memory_space<vmem>>, %arg9: memref<1x32xf32, #tpu.memory_space<vmem>>, %arg10: memref<1x8x32xf32, #tpu.memory_space<vmem>>) attributes {dimension_semantics = [#tpu.dimension_semantics<parallel>], iteration_bounds = array<i64: 2>, scalar_prefetch = 0 : i64, scratch_operands = 0 : i64, tpu.core_type = #tpu.core_type<tc>, window_params = [{transform_indices = @transform_0, window_bounds = array<i64: 1, 8, 32>}, {pipeline_mode = #tpu.pipeline_mode<synchronous>, transform_indices = @transform_1, window_bounds = array<i64: 32, 32>}, {pipeline_mode = #tpu.pipeline_mode<synchronous>, transform_indices = @transform_2, window_bounds = array<i64: 32, 32>}, {pipeline_mode = #tpu.pipeline_mode<synchronous>, transform_indices = @transform_3, window_bounds = array<i64: 32, 32>}, {pipeline_mode = #tpu.pipeline_mode<synchronous>, transform_indices = @transform_4, window_bounds = array<i64: 1, 32>}, {pipeline_mode = #tpu.pipeline_mode<synchronous>, transform_indices = @transform_5, window_bounds = array<i64: 1, 32>}, {pipeline_mode = #tpu.pipeline_mode<synchronous>, transform_indices = @transform_6, window_bounds = array<i64: 1, 32>}, {pipeline_mode = #tpu.pipeline_mode<synchronous>, transform_indices = @transform_7, window_bounds = array<i64: 32, 32>}, {pipeline_mode = #tpu.pipeline_mode<synchronous>, transform_indices = @transform_8, window_bounds = array<i64: 1, 32>}, {transform_indices = @transform_9, window_bounds = array<i64: 1, 8, 32>}]} {
    %c0 = arith.constant 0 : index
    %c0_0 = arith.constant 0 : index
    %c0_1 = arith.constant 0 : index
    %0 = vector.load %arg1[%c0, %c0_0, %c0_1] : memref<1x8x32xf32, #tpu.memory_space<vmem>>, vector<1x8x32xf32>
    %1 = vector.shape_cast %0 : vector<1x8x32xf32> to vector<8x32xf32>
    %c0_2 = arith.constant 0 : index
    %c0_3 = arith.constant 0 : index
    %2 = vector.load %arg2[%c0_2, %c0_3] : memref<32x32xf32, #tpu.memory_space<vmem>>, vector<32x32xf32>
    %cst = arith.constant dense<0.000000e+00> : vector<8x32xf32>
    %3 = tpu.matmul %1, %2, %cst {dimension_numbers = #tpu.dot_dimension_numbers<[1], [0], [0], [1], [0, 0, 1, 1], [], []>} : vector<8x32xf32>, vector<32x32xf32>, vector<8x32xf32> -> vector<8x32xf32>
    %c0_4 = arith.constant 0 : index
    %c0_5 = arith.constant 0 : index
    %4 = vector.load %arg5[%c0_4, %c0_5] : memref<1x32xf32, #tpu.memory_space<vmem>>, vector<1x32xf32>
    %5 = vector.broadcast %4 : vector<1x32xf32> to vector<8x32xf32>
    %6 = arith.addf %3, %5 : vector<8x32xf32>
    %c0_6 = arith.constant 0 : index
    %c0_7 = arith.constant 0 : index
    %7 = vector.load %arg3[%c0_6, %c0_7] : memref<32x32xf32, #tpu.memory_space<vmem>>, vector<32x32xf32>
    %cst_8 = arith.constant dense<0.000000e+00> : vector<8x32xf32>
    %8 = tpu.matmul %1, %7, %cst_8 {dimension_numbers = #tpu.dot_dimension_numbers<[1], [0], [0], [1], [0, 0, 1, 1], [], []>} : vector<8x32xf32>, vector<32x32xf32>, vector<8x32xf32> -> vector<8x32xf32>
    %c0_9 = arith.constant 0 : index
    %c0_10 = arith.constant 0 : index
    %9 = vector.load %arg6[%c0_9, %c0_10] : memref<1x32xf32, #tpu.memory_space<vmem>>, vector<1x32xf32>
    %10 = vector.broadcast %9 : vector<1x32xf32> to vector<8x32xf32>
    %11 = arith.addf %8, %10 : vector<8x32xf32>
    %c0_11 = arith.constant 0 : index
    %c0_12 = arith.constant 0 : index
    %12 = vector.load %arg4[%c0_11, %c0_12] : memref<32x32xf32, #tpu.memory_space<vmem>>, vector<32x32xf32>
    %cst_13 = arith.constant dense<0.000000e+00> : vector<8x32xf32>
    %13 = tpu.matmul %1, %12, %cst_13 {dimension_numbers = #tpu.dot_dimension_numbers<[1], [0], [0], [1], [0, 0, 1, 1], [], []>} : vector<8x32xf32>, vector<32x32xf32>, vector<8x32xf32> -> vector<8x32xf32>
    %c0_14 = arith.constant 0 : index
    %c0_15 = arith.constant 0 : index
    %14 = vector.load %arg7[%c0_14, %c0_15] : memref<1x32xf32, #tpu.memory_space<vmem>>, vector<1x32xf32>
    %15 = vector.broadcast %14 : vector<1x32xf32> to vector<8x32xf32>
    %16 = arith.addf %13, %15 : vector<8x32xf32>
    %cst_16 = arith.constant 0.000000e+00 : f32
    %17 = vector.broadcast %cst_16 : f32 to vector<8x32xf32>
    %18 = vector.extract_strided_slice %6 {offsets = [0, 0], sizes = [8, 8], strides = [1, 1]} : vector<8x32xf32> to vector<8x8xf32>
    %19 = vector.extract_strided_slice %11 {offsets = [0, 0], sizes = [8, 8], strides = [1, 1]} : vector<8x32xf32> to vector<8x8xf32>
    %20 = vector.extract_strided_slice %16 {offsets = [0, 0], sizes = [8, 8], strides = [1, 1]} : vector<8x32xf32> to vector<8x8xf32>
    %cst_17 = arith.constant dense<0.000000e+00> : vector<8x8xf32>
    %21 = tpu.matmul %18, %19, %cst_17 {dimension_numbers = #tpu.dot_dimension_numbers<[1], [1], [0], [0], [0, 0, 1, 0], [], []>} : vector<8x8xf32>, vector<8x8xf32>, vector<8x8xf32> -> vector<8x8xf32>
    %cst_18 = arith.constant 0.353553385 : f32
    %22 = vector.broadcast %cst_18 : f32 to vector<8x8xf32>
    %23 = arith.mulf %21, %22 : vector<8x8xf32>
    %cst_19 = arith.constant dense<0xFF800000> : vector<8xf32>
    %24 = vector.multi_reduction <maximumf>, %23, %cst_19 [1] : vector<8x8xf32> to vector<8xf32>
    %25 = vector.shape_cast %24 : vector<8xf32> to vector<8x1xf32>
    %26 = vector.broadcast %25 : vector<8x1xf32> to vector<8x8xf32>
    %27 = arith.subf %23, %26 : vector<8x8xf32>
    %28 = math.exp %27 : vector<8x8xf32>
    %cst_20 = arith.constant dense<0.000000e+00> : vector<8xf32>
    %29 = vector.multi_reduction <add>, %28, %cst_20 [1] : vector<8x8xf32> to vector<8xf32>
    %30 = vector.shape_cast %29 : vector<8xf32> to vector<8x1xf32>
    %31 = tpu.reciprocal %30 {approx = true} : vector<8x1xf32> -> vector<8x1xf32>
    %32 = vector.broadcast %31 : vector<8x1xf32> to vector<8x8xf32>
    %33 = arith.mulf %28, %32 : vector<8x8xf32>
    %cst_21 = arith.constant dense<0.000000e+00> : vector<8x8xf32>
    %34 = tpu.matmul %33, %20, %cst_21 {dimension_numbers = #tpu.dot_dimension_numbers<[1], [0], [0], [1], [0, 0, 1, 1], [], []>} : vector<8x8xf32>, vector<8x8xf32>, vector<8x8xf32> -> vector<8x8xf32>
    %c0_22 = arith.constant 0 : index
    %c0_23 = arith.constant 0 : index
    %35 = vector.load %arg8[%c0_22, %c0_23] : memref<32x32xf32, #tpu.memory_space<vmem>>, vector<8x32xf32>
    %cst_24 = arith.constant dense<0.000000e+00> : vector<8x32xf32>
    %36 = tpu.matmul %34, %35, %cst_24 {dimension_numbers = #tpu.dot_dimension_numbers<[1], [0], [0], [1], [0, 0, 1, 1], [], []>} : vector<8x8xf32>, vector<8x32xf32>, vector<8x32xf32> -> vector<8x32xf32>
    %37 = arith.addf %17, %36 : vector<8x32xf32>
    %38 = vector.extract_strided_slice %6 {offsets = [0, 8], sizes = [8, 8], strides = [1, 1]} : vector<8x32xf32> to vector<8x8xf32>
    %39 = vector.extract_strided_slice %11 {offsets = [0, 8], sizes = [8, 8], strides = [1, 1]} : vector<8x32xf32> to vector<8x8xf32>
    %40 = vector.extract_strided_slice %16 {offsets = [0, 8], sizes = [8, 8], strides = [1, 1]} : vector<8x32xf32> to vector<8x8xf32>
    %cst_25 = arith.constant dense<0.000000e+00> : vector<8x8xf32>
    %41 = tpu.matmul %38, %39, %cst_25 {dimension_numbers = #tpu.dot_dimension_numbers<[1], [1], [0], [0], [0, 0, 1, 0], [], []>} : vector<8x8xf32>, vector<8x8xf32>, vector<8x8xf32> -> vector<8x8xf32>
    %cst_26 = arith.constant 0.353553385 : f32
    %42 = vector.broadcast %cst_26 : f32 to vector<8x8xf32>
    %43 = arith.mulf %41, %42 : vector<8x8xf32>
    %cst_27 = arith.constant dense<0xFF800000> : vector<8xf32>
    %44 = vector.multi_reduction <maximumf>, %43, %cst_27 [1] : vector<8x8xf32> to vector<8xf32>
    %45 = vector.shape_cast %44 : vector<8xf32> to vector<8x1xf32>
    %46 = vector.broadcast %45 : vector<8x1xf32> to vector<8x8xf32>
    %47 = arith.subf %43, %46 : vector<8x8xf32>
    %48 = math.exp %47 : vector<8x8xf32>
    %cst_28 = arith.constant dense<0.000000e+00> : vector<8xf32>
    %49 = vector.multi_reduction <add>, %48, %cst_28 [1] : vector<8x8xf32> to vector<8xf32>
    %50 = vector.shape_cast %49 : vector<8xf32> to vector<8x1xf32>
    %51 = tpu.reciprocal %50 {approx = true} : vector<8x1xf32> -> vector<8x1xf32>
    %52 = vector.broadcast %51 : vector<8x1xf32> to vector<8x8xf32>
    %53 = arith.mulf %48, %52 : vector<8x8xf32>
    %cst_29 = arith.constant dense<0.000000e+00> : vector<8x8xf32>
    %54 = tpu.matmul %53, %40, %cst_29 {dimension_numbers = #tpu.dot_dimension_numbers<[1], [0], [0], [1], [0, 0, 1, 1], [], []>} : vector<8x8xf32>, vector<8x8xf32>, vector<8x8xf32> -> vector<8x8xf32>
    %c8 = arith.constant 8 : index
    %c0_30 = arith.constant 0 : index
    %55 = vector.load %arg8[%c8, %c0_30] : memref<32x32xf32, #tpu.memory_space<vmem>>, vector<8x32xf32>
    %cst_31 = arith.constant dense<0.000000e+00> : vector<8x32xf32>
    %56 = tpu.matmul %54, %55, %cst_31 {dimension_numbers = #tpu.dot_dimension_numbers<[1], [0], [0], [1], [0, 0, 1, 1], [], []>} : vector<8x8xf32>, vector<8x32xf32>, vector<8x32xf32> -> vector<8x32xf32>
    %57 = arith.addf %37, %56 : vector<8x32xf32>
    %58 = vector.extract_strided_slice %6 {offsets = [0, 16], sizes = [8, 8], strides = [1, 1]} : vector<8x32xf32> to vector<8x8xf32>
    %59 = vector.extract_strided_slice %11 {offsets = [0, 16], sizes = [8, 8], strides = [1, 1]} : vector<8x32xf32> to vector<8x8xf32>
    %60 = vector.extract_strided_slice %16 {offsets = [0, 16], sizes = [8, 8], strides = [1, 1]} : vector<8x32xf32> to vector<8x8xf32>
    %cst_32 = arith.constant dense<0.000000e+00> : vector<8x8xf32>
    %61 = tpu.matmul %58, %59, %cst_32 {dimension_numbers = #tpu.dot_dimension_numbers<[1], [1], [0], [0], [0, 0, 1, 0], [], []>} : vector<8x8xf32>, vector<8x8xf32>, vector<8x8xf32> -> vector<8x8xf32>
    %cst_33 = arith.constant 0.353553385 : f32
    %62 = vector.broadcast %cst_33 : f32 to vector<8x8xf32>
    %63 = arith.mulf %61, %62 : vector<8x8xf32>
    %cst_34 = arith.constant dense<0xFF800000> : vector<8xf32>
    %64 = vector.multi_reduction <maximumf>, %63, %cst_34 [1] : vector<8x8xf32> to vector<8xf32>
    %65 = vector.shape_cast %64 : vector<8xf32> to vector<8x1xf32>
    %66 = vector.broadcast %65 : vector<8x1xf32> to vector<8x8xf32>
    %67 = arith.subf %63, %66 : vector<8x8xf32>
    %68 = math.exp %67 : vector<8x8xf32>
    %cst_35 = arith.constant dense<0.000000e+00> : vector<8xf32>
    %69 = vector.multi_reduction <add>, %68, %cst_35 [1] : vector<8x8xf32> to vector<8xf32>
    %70 = vector.shape_cast %69 : vector<8xf32> to vector<8x1xf32>
    %71 = tpu.reciprocal %70 {approx = true} : vector<8x1xf32> -> vector<8x1xf32>
    %72 = vector.broadcast %71 : vector<8x1xf32> to vector<8x8xf32>
    %73 = arith.mulf %68, %72 : vector<8x8xf32>
    %cst_36 = arith.constant dense<0.000000e+00> : vector<8x8xf32>
    %74 = tpu.matmul %73, %60, %cst_36 {dimension_numbers = #tpu.dot_dimension_numbers<[1], [0], [0], [1], [0, 0, 1, 1], [], []>} : vector<8x8xf32>, vector<8x8xf32>, vector<8x8xf32> -> vector<8x8xf32>
    %c16 = arith.constant 16 : index
    %c0_37 = arith.constant 0 : index
    %75 = vector.load %arg8[%c16, %c0_37] : memref<32x32xf32, #tpu.memory_space<vmem>>, vector<8x32xf32>
    %cst_38 = arith.constant dense<0.000000e+00> : vector<8x32xf32>
    %76 = tpu.matmul %74, %75, %cst_38 {dimension_numbers = #tpu.dot_dimension_numbers<[1], [0], [0], [1], [0, 0, 1, 1], [], []>} : vector<8x8xf32>, vector<8x32xf32>, vector<8x32xf32> -> vector<8x32xf32>
    %77 = arith.addf %57, %76 : vector<8x32xf32>
    %78 = vector.extract_strided_slice %6 {offsets = [0, 24], sizes = [8, 8], strides = [1, 1]} : vector<8x32xf32> to vector<8x8xf32>
    %79 = vector.extract_strided_slice %11 {offsets = [0, 24], sizes = [8, 8], strides = [1, 1]} : vector<8x32xf32> to vector<8x8xf32>
    %80 = vector.extract_strided_slice %16 {offsets = [0, 24], sizes = [8, 8], strides = [1, 1]} : vector<8x32xf32> to vector<8x8xf32>
    %cst_39 = arith.constant dense<0.000000e+00> : vector<8x8xf32>
    %81 = tpu.matmul %78, %79, %cst_39 {dimension_numbers = #tpu.dot_dimension_numbers<[1], [1], [0], [0], [0, 0, 1, 0], [], []>} : vector<8x8xf32>, vector<8x8xf32>, vector<8x8xf32> -> vector<8x8xf32>
    %cst_40 = arith.constant 0.353553385 : f32
    %82 = vector.broadcast %cst_40 : f32 to vector<8x8xf32>
    %83 = arith.mulf %81, %82 : vector<8x8xf32>
    %cst_41 = arith.constant dense<0xFF800000> : vector<8xf32>
    %84 = vector.multi_reduction <maximumf>, %83, %cst_41 [1] : vector<8x8xf32> to vector<8xf32>
    %85 = vector.shape_cast %84 : vector<8xf32> to vector<8x1xf32>
    %86 = vector.broadcast %85 : vector<8x1xf32> to vector<8x8xf32>
    %87 = arith.subf %83, %86 : vector<8x8xf32>
    %88 = math.exp %87 : vector<8x8xf32>
    %cst_42 = arith.constant dense<0.000000e+00> : vector<8xf32>
    %89 = vector.multi_reduction <add>, %88, %cst_42 [1] : vector<8x8xf32> to vector<8xf32>
    %90 = vector.shape_cast %89 : vector<8xf32> to vector<8x1xf32>
    %91 = tpu.reciprocal %90 {approx = true} : vector<8x1xf32> -> vector<8x1xf32>
    %92 = vector.broadcast %91 : vector<8x1xf32> to vector<8x8xf32>
    %93 = arith.mulf %88, %92 : vector<8x8xf32>
    %cst_43 = arith.constant dense<0.000000e+00> : vector<8x8xf32>
    %94 = tpu.matmul %93, %80, %cst_43 {dimension_numbers = #tpu.dot_dimension_numbers<[1], [0], [0], [1], [0, 0, 1, 1], [], []>} : vector<8x8xf32>, vector<8x8xf32>, vector<8x8xf32> -> vector<8x8xf32>
    %c24 = arith.constant 24 : index
    %c0_44 = arith.constant 0 : index
    %95 = vector.load %arg8[%c24, %c0_44] : memref<32x32xf32, #tpu.memory_space<vmem>>, vector<8x32xf32>
    %cst_45 = arith.constant dense<0.000000e+00> : vector<8x32xf32>
    %96 = tpu.matmul %94, %95, %cst_45 {dimension_numbers = #tpu.dot_dimension_numbers<[1], [0], [0], [1], [0, 0, 1, 1], [], []>} : vector<8x8xf32>, vector<8x32xf32>, vector<8x32xf32> -> vector<8x32xf32>
    %97 = arith.addf %77, %96 : vector<8x32xf32>
    %c0_46 = arith.constant 0 : index
    %c0_47 = arith.constant 0 : index
    %98 = vector.load %arg9[%c0_46, %c0_47] : memref<1x32xf32, #tpu.memory_space<vmem>>, vector<1x32xf32>
    %99 = vector.broadcast %98 : vector<1x32xf32> to vector<8x32xf32>
    %100 = arith.addf %97, %99 : vector<8x32xf32>
    %c0_48 = arith.constant 0 : index
    %c0_49 = arith.constant 0 : index
    %c0_50 = arith.constant 0 : index
    %101 = vector.load %arg10[%c0_48, %c0_49, %c0_50] : memref<1x8x32xf32, #tpu.memory_space<vmem>>, vector<1x8x32xf32>
    %102 = vector.shape_cast %101 : vector<1x8x32xf32> to vector<8x32xf32>
    %103 = vector.shape_cast %100 : vector<8x32xf32> to vector<1x8x32xf32>
    tpu.vector_store %arg10[%c0_48, %c0_49, %c0_50], %103 {strides = array<i32>} : memref<1x8x32xf32, #tpu.memory_space<vmem>>, vector<1x8x32xf32>,
    return
  }
  func.func @transform_0(%arg0: i32) -> (i32, i32, i32) {
    %c0_i32 = arith.constant 0 : i32
    %c0_i32_0 = arith.constant 0 : i32
    %c0_i32_1 = arith.constant 0 : i32
    return %arg0, %c0_i32, %c0_i32_0 : i32, i32, i32
  }
  func.func @transform_1(%arg0: i32) -> (i32, i32) {
    %c0_i32 = arith.constant 0 : i32
    %c0_i32_0 = arith.constant 0 : i32
    %c0_i32_1 = arith.constant 0 : i32
    return %c0_i32, %c0_i32_0 : i32, i32
  }
  func.func @transform_2(%arg0: i32) -> (i32, i32) {
    %c0_i32 = arith.constant 0 : i32
    %c0_i32_0 = arith.constant 0 : i32
    %c0_i32_1 = arith.constant 0 : i32
    return %c0_i32, %c0_i32_0 : i32, i32
  }
  func.func @transform_3(%arg0: i32) -> (i32, i32) {
    %c0_i32 = arith.constant 0 : i32
    %c0_i32_0 = arith.constant 0 : i32
    %c0_i32_1 = arith.constant 0 : i32
    return %c0_i32, %c0_i32_0 : i32, i32
  }
  func.func @transform_4(%arg0: i32) -> (i32, i32) {
    %c0_i32 = arith.constant 0 : i32
    %c0_i32_0 = arith.constant 0 : i32
    %c0_i32_1 = arith.constant 0 : i32
    return %c0_i32, %c0_i32_0 : i32, i32
  }
  func.func @transform_5(%arg0: i32) -> (i32, i32) {
    %c0_i32 = arith.constant 0 : i32
    %c0_i32_0 = arith.constant 0 : i32
    %c0_i32_1 = arith.constant 0 : i32
    return %c0_i32, %c0_i32_0 : i32, i32
  }
  func.func @transform_6(%arg0: i32) -> (i32, i32) {
    %c0_i32 = arith.constant 0 : i32
    %c0_i32_0 = arith.constant 0 : i32
    %c0_i32_1 = arith.constant 0 : i32
    return %c0_i32, %c0_i32_0 : i32, i32
  }
  func.func @transform_7(%arg0: i32) -> (i32, i32) {
    %c0_i32 = arith.constant 0 : i32
    %c0_i32_0 = arith.constant 0 : i32
    %c0_i32_1 = arith.constant 0 : i32
    return %c0_i32, %c0_i32_0 : i32, i32
  }
  func.func @transform_8(%arg0: i32) -> (i32, i32) {
    %c0_i32 = arith.constant 0 : i32
    %c0_i32_0 = arith.constant 0 : i32
    %c0_i32_1 = arith.constant 0 : i32
    return %c0_i32, %c0_i32_0 : i32, i32
  }
  func.func @transform_9(%arg0: i32) -> (i32, i32, i32) {
    %c0_i32 = arith.constant 0 : i32
    %c0_i32_0 = arith.constant 0 : i32
    %c0_i32_1 = arith.constant 0 : i32
    return %arg0, %c0_i32, %c0_i32_0 : i32, i32, i32
  }
}

</mosaic_0001>

<llo_original>
// kernel: tpu_custom_call.1
$region0: #{tpu_custom_call.1}
  #allocation0 [shape = 'u32[]', space=smem, size = 0x4, offset = 0x4, fixed_abs, tag = 'smem constant byte address 0x4 - core index']
  #allocation1 [shape = 'u32[72,128]{1,0:T(1,128)}', space=vmem, size = 0x9000, scoped, tag = 'internal scratch']
  %s0 = inlined_call_operand.hbm [shape: f32[2,8,32], index: 0, kind: input, shape index: {}]
  %s1 = inlined_call_operand.hbm [shape: f32[32,32], index: 1, kind: input, shape index: {}]
  %s2 = inlined_call_operand.hbm [shape: f32[32,32], index: 2, kind: input, shape index: {}]
  %s3 = inlined_call_operand.hbm [shape: f32[32,32], index: 3, kind: input, shape index: {}]
  %s4 = inlined_call_operand.vmem [shape: f32[1,32], index: 4, kind: input, shape index: {}]
  %s5 = inlined_call_operand.vmem [shape: f32[1,32], index: 5, kind: input, shape index: {}]
  %s6 = inlined_call_operand.vmem [shape: f32[1,32], index: 6, kind: input, shape index: {}]
  %s7 = inlined_call_operand.hbm [shape: f32[32,32], index: 7, kind: input, shape index: {}]
  %s8 = inlined_call_operand.vmem [shape: f32[1,32], index: 8, kind: input, shape index: {}]
  %s9 = inlined_call_operand.hbm [shape: f32[2,8,32], index: 9, kind: output, shape index: {}]
  %s10 = sld [smem:[#allocation0]]
  $region89: #{tpu_custom_call.1} parent=0
    _
  %s12 = ssub.s32 1, %s10
  %s13 = scalar_select 0, %s12, %s10
  $region1: #{tpu_custom_call.1} parent=0
    #allocation2 [shape = 'u8[8192]{0}', space=vmem, size = 0x2000, scoped, tag = 'input window, operand 0']
    #allocation3 [shape = 's32[2]{0}', space=sflag, size = 0x8, scoped, tag = 'scoped memory for tpu_custom_call.1']
    #allocation4 [shape = 's32[2]{0}', space=sflag, size = 0x8, scoped, tag = 'scoped memory for tpu_custom_call.1']
    #allocation5 [shape = 'u8[16384]{0}', space=vmem, size = 0x4000, scoped, tag = 'input window, operand 1, single buffered']
    #allocation6 [shape = 's32[1]{0}', space=sflag, size = 0x4, scoped, tag = 'scoped memory for tpu_custom_call.1']
    #allocation7 [shape = 'u8[16384]{0}', space=vmem, size = 0x4000, scoped, tag = 'input window, operand 2, single buffered']
    #allocation8 [shape = 'u8[16384]{0}', space=vmem, size = 0x4000, scoped, tag = 'input window, operand 3, single buffered']
    #allocation9 [shape = 's32[1]{0}', space=sflag, size = 0x4, scoped, tag = 'scoped memory for tpu_custom_call.1']
    #allocation10 [shape = 'u8[16384]{0}', space=vmem, size = 0x4000, scoped, tag = 'input window, operand 7, single buffered']
    #allocation11 [shape = 'u8[8192]{0}', space=vmem, size = 0x2000, scoped, tag = 'output window, operand 0']
    %14 = vsyncpa [#allocation3], 0
    %s15 = scalar_lea.sflag [#allocation3], 1
    %16 = vsyncpa %s15, 0
    %17 = vsyncpa [#allocation6], 0
    %18 = vsyncpa [#allocation9], 0
    %19 = vsyncpa [#allocation4], 0
    %s20 = scalar_lea.sflag [#allocation4], 1
    %21 = vsyncpa %s20, 0
    loop: start=0, step=1, limit=4
    $region2: #{tpu_custom_call.1} parent=1 // loop_pre_header
      _
    $region3: #{tpu_custom_call.1} parent=1 // loop_header
      %s23 = sphi 0, %s27
      %p24 = scmp.ge.s32.totalorder %s23, 4
      %s33 = sphi 0, %s35
      %s36 = sphi 0, %s33
      %s37 = sphi 0, %s36
      %s53 = sphi 0, %s37
      %s57 = sphi 0, %s57
      %s59 = sphi 0, %s57
      %s60 = sphi 0, %s59
      %s74 = sphi 0, %s60
      %s78 = sphi 0, %s78
      %s80 = sphi 0, %s78
      %s81 = sphi 0, %s80
      %s95 = sphi 0, %s81
      %s99 = sphi 0, %s99
      %s101 = sphi 0, %s99
      %s102 = sphi 0, %s101
      %s116 = sphi 0, %s102
      %s120 = sphi 0, %s120
      %s122 = sphi 0, %s120
      %s123 = sphi 0, %s122
      %s137 = sphi 0, %s123
      %s141 = sphi 0, %s141
      %s143 = sphi 0, %s141
      %s144 = sphi 0, %s143
      %s158 = sphi 0, %s144
      %s162 = sphi 0, %s162
      %s164 = sphi 0, %s162
      %s165 = sphi 0, %s164
      %s179 = sphi 0, %s165
      %s183 = sphi 0, %s183
      %s185 = sphi 0, %s183
      %s186 = sphi 0, %s185
      %s200 = sphi 0, %s186
      %s204 = sphi 0, %s204
      %s206 = sphi 0, %s204
      %s207 = sphi 0, %s206
      %s221 = sphi 0, %s207
      %s227 = sphi 0, %s229
      %s230 = sphi 0, %s227
      %s231 = sphi 0, %s230
      %s247 = sphi 0, %s231
    $region4: #{tpu_custom_call.1} parent=1 // loop_header_branch
      %26 = sbr.rel (%p24) target = $region8
    $region5: #{tpu_custom_call.1} parent=1 // loop_body
      %s28 = ssub.s32 %s23, 1
      %s29 = ssub.s32 %s23, 2
      %s30 = sadd.s32 %s23, 1
      %s31 = ssub.s32 %s23, %s30
      %p32 = scmp.eq.s32.totalorder %s31, 0
      %s34 = sadd.s32 %s33, 1
      %s35 = scalar_select %p32, %s33, %s34
      %p38 = pneg %p32
      %p39 = scmp.eq.s32.totalorder %s23, 1
      %p40 = por %p38, %p39
      %p41 = scmp.ne.s32.totalorder %s33, %s36
      %p42 = scmp.eq.s32.totalorder %s23, 0
      %p43 = por %p41, %p42
      %p44 = scmp.ne.s32.totalorder %s33, %s36
      %p45 = scmp.eq.s32.totalorder %s28, 1
      %p46 = por %p44, %p45
      %p47 = scmp.ne.s32.totalorder %s36, %s37
      %p48 = scmp.eq.s32.totalorder %s28, 0
      %p49 = por %p47, %p48
      %p50 = scmp.ne.s32.totalorder %s36, %s37
      %p51 = scmp.eq.s32.totalorder %s29, 1
      %p52 = por %p50, %p51
      %p54 = scmp.ne.s32.totalorder %s37, %s53
      %p55 = scmp.eq.s32.totalorder %s29, 0
      %p56 = por %p54, %p55
      %s58 = sadd.s32 %s57, 1
      %p61 = scmp.eq.s32.totalorder %s23, 1
      %p62 = scmp.ne.s32.totalorder %s57, %s59
      %p63 = scmp.eq.s32.totalorder %s23, 0
      %p64 = por %p62, %p63
      %p65 = scmp.ne.s32.totalorder %s57, %s59
      %p66 = scmp.eq.s32.totalorder %s28, 1
      %p67 = por %p65, %p66
      %p68 = scmp.ne.s32.totalorder %s59, %s60
      %p69 = scmp.eq.s32.totalorder %s28, 0
      %p70 = por %p68, %p69
      %p71 = scmp.ne.s32.totalorder %s59, %s60
      %p72 = scmp.eq.s32.totalorder %s29, 1
      %p73 = por %p71, %p72
      %p75 = scmp.ne.s32.totalorder %s60, %s74
      %p76 = scmp.eq.s32.totalorder %s29, 0
      %p77 = por %p75, %p76
      %s79 = sadd.s32 %s78, 1
      %p82 = scmp.eq.s32.totalorder %s23, 1
      %p83 = scmp.ne.s32.totalorder %s78, %s80
      %p84 = scmp.eq.s32.totalorder %s23, 0
      %p85 = por %p83, %p84
      %p86 = scmp.ne.s32.totalorder %s78, %s80
      %p87 = scmp.eq.s32.totalorder %s28, 1
      %p88 = por %p86, %p87
      %p89 = scmp.ne.s32.totalorder %s80, %s81
      %p90 = scmp.eq.s32.totalorder %s28, 0
      %p91 = por %p89, %p90
      %p92 = scmp.ne.s32.totalorder %s80, %s81
      %p93 = scmp.eq.s32.totalorder %s29, 1
      %p94 = por %p92, %p93
      %p96 = scmp.ne.s32.totalorder %s81, %s95
      %p97 = scmp.eq.s32.totalorder %s29, 0
      %p98 = por %p96, %p97
      %s100 = sadd.s32 %s99, 1
      %p103 = scmp.eq.s32.totalorder %s23, 1
      %p104 = scmp.ne.s32.totalorder %s99, %s101
      %p105 = scmp.eq.s32.totalorder %s23, 0
      %p106 = por %p104, %p105
      %p107 = scmp.ne.s32.totalorder %s99, %s101
      %p108 = scmp.eq.s32.totalorder %s28, 1
      %p109 = por %p107, %p108
      %p110 = scmp.ne.s32.totalorder %s101, %s102
      %p111 = scmp.eq.s32.totalorder %s28, 0
      %p112 = por %p110, %p111
      %p113 = scmp.ne.s32.totalorder %s101, %s102
      %p114 = scmp.eq.s32.totalorder %s29, 1
      %p115 = por %p113, %p114
      %p117 = scmp.ne.s32.totalorder %s102, %s116
      %p118 = scmp.eq.s32.totalorder %s29, 0
      %p119 = por %p117, %p118
      %s121 = sadd.s32 %s120, 1
      %p124 = scmp.eq.s32.totalorder %s23, 1
      %p125 = scmp.ne.s32.totalorder %s120, %s122
      %p126 = scmp.eq.s32.totalorder %s23, 0
      %p127 = por %p125, %p126
      %p128 = scmp.ne.s32.totalorder %s120, %s122
      %p129 = scmp.eq.s32.totalorder %s28, 1
      %p130 = por %p128, %p129
      %p131 = scmp.ne.s32.totalorder %s122, %s123
      %p132 = scmp.eq.s32.totalorder %s28, 0
      %p133 = por %p131, %p132
      %p134 = scmp.ne.s32.totalorder %s122, %s123
      %p135 = scmp.eq.s32.totalorder %s29, 1
      %p136 = por %p134, %p135
      %p138 = scmp.ne.s32.totalorder %s123, %s137
      %p139 = scmp.eq.s32.totalorder %s29, 0
      %p140 = por %p138, %p139
      %s142 = sadd.s32 %s141, 1
      %p145 = scmp.eq.s32.totalorder %s23, 1
      %p146 = scmp.ne.s32.totalorder %s141, %s143
      %p147 = scmp.eq.s32.totalorder %s23, 0
      %p148 = por %p146, %p147
      %p149 = scmp.ne.s32.totalorder %s141, %s143
      %p150 = scmp.eq.s32.totalorder %s28, 1
      %p151 = por %p149, %p150
      %p152 = scmp.ne.s32.totalorder %s143, %s144
      %p153 = scmp.eq.s32.totalorder %s28, 0
      %p154 = por %p152, %p153
      %p155 = scmp.ne.s32.totalorder %s143, %s144
      %p156 = scmp.eq.s32.totalorder %s29, 1
      %p157 = por %p155, %p156
      %p159 = scmp.ne.s32.totalorder %s144, %s158
      %p160 = scmp.eq.s32.totalorder %s29, 0
      %p161 = por %p159, %p160
      %s163 = sadd.s32 %s162, 1
      %p166 = scmp.eq.s32.totalorder %s23, 1
      %p167 = scmp.ne.s32.totalorder %s162, %s164
      %p168 = scmp.eq.s32.totalorder %s23, 0
      %p169 = por %p167, %p168
      %p170 = scmp.ne.s32.totalorder %s162, %s164
      %p171 = scmp.eq.s32.totalorder %s28, 1
      %p172 = por %p170, %p171
      %p173 = scmp.ne.s32.totalorder %s164, %s165
      %p174 = scmp.eq.s32.totalorder %s28, 0
      %p175 = por %p173, %p174
      %p176 = scmp.ne.s32.totalorder %s164, %s165
      %p177 = scmp.eq.s32.totalorder %s29, 1
      %p178 = por %p176, %p177
      %p180 = scmp.ne.s32.totalorder %s165, %s179
      %p181 = scmp.eq.s32.totalorder %s29, 0
      %p182 = por %p180, %p181
      %s184 = sadd.s32 %s183, 1
      %p187 = scmp.eq.s32.totalorder %s23, 1
      %p188 = scmp.ne.s32.totalorder %s183, %s185
      %p189 = scmp.eq.s32.totalorder %s23, 0
      %p190 = por %p188, %p189
      %p191 = scmp.ne.s32.totalorder %s183, %s185
      %p192 = scmp.eq.s32.totalorder %s28, 1
      %p193 = por %p191, %p192
      %p194 = scmp.ne.s32.totalorder %s185, %s186
      %p195 = scmp.eq.s32.totalorder %s28, 0
      %p196 = por %p194, %p195
      %p197 = scmp.ne.s32.totalorder %s185, %s186
      %p198 = scmp.eq.s32.totalorder %s29, 1
      %p199 = por %p197, %p198
      %p201 = scmp.ne.s32.totalorder %s186, %s200
      %p202 = scmp.eq.s32.totalorder %s29, 0
      %p203 = por %p201, %p202
      %s205 = sadd.s32 %s204, 1
      %p208 = scmp.eq.s32.totalorder %s23, 1
      %p209 = scmp.ne.s32.totalorder %s204, %s206
      %p210 = scmp.eq.s32.totalorder %s23, 0
      %p211 = por %p209, %p210
      %p212 = scmp.ne.s32.totalorder %s204, %s206
      %p213 = scmp.eq.s32.totalorder %s28, 1
      %p214 = por %p212, %p213
      %p215 = scmp.ne.s32.totalorder %s206, %s207
      %p216 = scmp.eq.s32.totalorder %s28, 0
      %p217 = por %p215, %p216
      %p218 = scmp.ne.s32.totalorder %s206, %s207
      %p219 = scmp.eq.s32.totalorder %s29, 1
      %p220 = por %p218, %p219
      %p222 = scmp.ne.s32.totalorder %s207, %s221
      %p223 = scmp.eq.s32.totalorder %s29, 0
      %p224 = por %p222, %p223
      %s225 = ssub.s32 %s23, %s30
      %p226 = scmp.eq.s32.totalorder %s225, 0
      %s228 = sadd.s32 %s227, 1
      %s229 = scalar_select %p226, %s227, %s228
      %p232 = pneg %p226
      %p233 = scmp.eq.s32.totalorder %s23, 1
      %p234 = por %p232, %p233
      %p235 = scmp.ne.s32.totalorder %s227, %s230
      %p236 = scmp.eq.s32.totalorder %s23, 0
      %p237 = por %p235, %p236
      %p238 = scmp.ne.s32.totalorder %s227, %s230
      %p239 = scmp.eq.s32.totalorder %s28, 1
      %p240 = por %p238, %p239
      %p241 = scmp.ne.s32.totalorder %s230, %s231
      %p242 = scmp.eq.s32.totalorder %s28, 0
      %p243 = por %p241, %p242
      %p244 = scmp.ne.s32.totalorder %s230, %s231
      %p245 = scmp.eq.s32.totalorder %s29, 1
      %p246 = por %p244, %p245
      %p248 = scmp.ne.s32.totalorder %s231, %s247
      %p249 = scmp.eq.s32.totalorder %s29, 0
      %p250 = por %p248, %p249
      %p251 = scmp.le.s32.totalorder 1, %s23
      %p252 = scmp.lt.s32.totalorder %s23, 3
      %p253 = pnand %p251, %p252
      %p254 = pneg %p253
      // Predicated region
      $region9: #{tpu_custom_call.1} parent=5 // pred_check
        _
      $region10: #{tpu_custom_call.1} parent=5 // pred_check_branch
        %256 = sbr.rel (%p253) target = $region12
      $region11: #{tpu_custom_call.1} parent=5 // pred_region
        %s257 = ssub.s32 %s23, 1
        // Predicated region
        $region13: #{tpu_custom_call.1} parent=11 // pred_check
          %p258 = pneg %p70
        $region14: #{tpu_custom_call.1} parent=11 // pred_check_branch
          %260 = sbr.rel (%p258) target = $region16
        $region15: #{tpu_custom_call.1} parent=11 // pred_region
          %262 = vsyncadd [#allocation6], 0
          %s263 = sshll.u32 %s1, 4
          %s264 = int_to_ptr.hbm [resolvable:$true] %s263
          %s265 = sshll.u32 [#allocation5], 4
          %s266 = int_to_ptr.vmem [resolvable:$true] %s265
          %271 = dma.hbm_to_vmem [thread:$0]  %s264, 512, %s266, [#allocation6], 128, 128, 8
        $region16: #{tpu_custom_call.1} parent=11 // pred_fallthru
          _
        // Predicated region
        $region17: #{tpu_custom_call.1} parent=11 // pred_check
          %p272 = pneg %p91
        $region18: #{tpu_custom_call.1} parent=11 // pred_check_branch
          %274 = sbr.rel (%p272) target = $region20
        $region19: #{tpu_custom_call.1} parent=11 // pred_region
          %276 = vsyncadd [#allocation6], 0
          %s277 = sshll.u32 %s2, 4
          %s278 = int_to_ptr.hbm [resolvable:$true] %s277
          %s279 = sshll.u32 [#allocation7], 4
          %s280 = int_to_ptr.vmem [resolvable:$true] %s279
          %285 = dma.hbm_to_vmem [thread:$0]  %s278, 512, %s280, [#allocation6], 128, 128, 8
        $region20: #{tpu_custom_call.1} parent=11 // pred_fallthru
          _
        // Predicated region
        $region21: #{tpu_custom_call.1} parent=11 // pred_check
          %p286 = pneg %p112
        $region22: #{tpu_custom_call.1} parent=11 // pred_check_branch
          %288 = sbr.rel (%p286) target = $region24
        $region23: #{tpu_custom_call.1} parent=11 // pred_region
          %290 = vsyncadd [#allocation9], 0
          %s291 = sshll.u32 %s3, 4
          %s292 = int_to_ptr.hbm [resolvable:$true] %s291
          %s293 = sshll.u32 [#allocation8], 4
          %s294 = int_to_ptr.vmem [resolvable:$true] %s293
          %299 = dma.hbm_to_vmem [thread:$0]  %s292, 512, %s294, [#allocation9], 128, 128, 8
        $region24: #{tpu_custom_call.1} parent=11 // pred_fallthru
          _
        // Predicated region
        $region25: #{tpu_custom_call.1} parent=11 // pred_check
          %p300 = pneg %p133
        $region26: #{tpu_custom_call.1} parent=11 // pred_check_branch
          %302 = sbr.rel (%p300) target = $region28
        $region27: #{tpu_custom_call.1} parent=11 // pred_region
          _
        $region28: #{tpu_custom_call.1} parent=11 // pred_fallthru
          _
        // Predicated region
        $region29: #{tpu_custom_call.1} parent=11 // pred_check
          %p303 = pneg %p154
        $region30: #{tpu_custom_call.1} parent=11 // pred_check_branch
          %305 = sbr.rel (%p303) target = $region32
        $region31: #{tpu_custom_call.1} parent=11 // pred_region
          _
        $region32: #{tpu_custom_call.1} parent=11 // pred_fallthru
          _
        // Predicated region
        $region33: #{tpu_custom_call.1} parent=11 // pred_check
          %p306 = pneg %p175
        $region34: #{tpu_custom_call.1} parent=11 // pred_check_branch
          %308 = sbr.rel (%p306) target = $region36
        $region35: #{tpu_custom_call.1} parent=11 // pred_region
          _
        $region36: #{tpu_custom_call.1} parent=11 // pred_fallthru
          _
        // Predicated region
        $region37: #{tpu_custom_call.1} parent=11 // pred_check
          %p309 = pneg %p196
        $region38: #{tpu_custom_call.1} parent=11 // pred_check_branch
          %311 = sbr.rel (%p309) target = $region40
        $region39: #{tpu_custom_call.1} parent=11 // pred_region
          %313 = vsyncadd [#allocation9], 0
          %s314 = sshll.u32 %s7, 4
          %s315 = int_to_ptr.hbm [resolvable:$true] %s314
          %s316 = sshll.u32 [#allocation10], 4
          %s317 = int_to_ptr.vmem [resolvable:$true] %s316
          %322 = dma.hbm_to_vmem [thread:$0]  %s315, 512, %s317, [#allocation9], 128, 128, 8
        $region40: #{tpu_custom_call.1} parent=11 // pred_fallthru
          _
        // Predicated region
        $region41: #{tpu_custom_call.1} parent=11 // pred_check
          %p323 = pneg %p217
        $region42: #{tpu_custom_call.1} parent=11 // pred_check_branch
          %325 = sbr.rel (%p323) target = $region44
        $region43: #{tpu_custom_call.1} parent=11 // pred_region
          _
        $region44: #{tpu_custom_call.1} parent=11 // pred_fallthru
          _
      $region12: #{tpu_custom_call.1} parent=5 // pred_fallthru
        _
      %p326 = scmp.lt.s32.totalorder %s23, 2
      // Predicated region
      $region45: #{tpu_custom_call.1} parent=5 // pred_check
        %p327 = pneg %p326
      $region46: #{tpu_custom_call.1} parent=5 // pred_check_branch
        %329 = sbr.rel (%p327) target = $region48
      $region47: #{tpu_custom_call.1} parent=5 // pred_region
        // Predicated region
        $region49: #{tpu_custom_call.1} parent=47 // pred_check
          %p330 = pneg %p43
        $region50: #{tpu_custom_call.1} parent=47 // pred_check_branch
          %332 = sbr.rel (%p330) target = $region52
        $region51: #{tpu_custom_call.1} parent=47 // pred_region
          %s333 = sand.u32 %s33, 1
          %s334 = scalar_lea.sflag [#allocation3], %s333
          %s335 = sand.u32 %s33, 1
          %s336 = smul.addr %s335, 8
          %s337 = scalar_lea.vmem [#allocation2], %s336
          %339 = vsyncadd %s334, 0
          %s340 = smul.addr %s23, 8
          %s341 = scalar_lea.hbm %s0, %s340
          %s343 = sshll.u32 %s341, 4
          %s344 = int_to_ptr.hbm [resolvable:$true] %s343
          %s345 = sshll.u32 %s337, 4
          %s346 = int_to_ptr.vmem [resolvable:$true] %s345
          %348 = dma.hbm_to_vmem [thread:$0]  %s344, 128, %s346, %s334
        $region52: #{tpu_custom_call.1} parent=47 // pred_fallthru
          _
      $region48: #{tpu_custom_call.1} parent=5 // pred_fallthru
        _
      %p349 = scmp.le.s32.totalorder 1, %s23
      %p350 = scmp.lt.s32.totalorder %s23, 3
      %p351 = pnand %p349, %p350
      %p352 = pneg %p351
      // Predicated region
      $region53: #{tpu_custom_call.1} parent=5 // pred_check
        _
      $region54: #{tpu_custom_call.1} parent=5 // pred_check_branch
        %354 = sbr.rel (%p351) target = $region56
      $region55: #{tpu_custom_call.1} parent=5 // pred_region
        %s355 = ssub.s32 %s23, 1
        %s356 = sand.u32 %s36, 1
        %s357 = scalar_lea.sflag [#allocation3], %s356
        %s358 = sand.u32 %s36, 1
        %s359 = smul.addr %s358, 8
        %s360 = scalar_lea.vmem [#allocation2], %s359
        // Predicated region
        $region57: #{tpu_custom_call.1} parent=55 // pred_check
          %p361 = pneg %p49
        $region58: #{tpu_custom_call.1} parent=55 // pred_check_branch
          %363 = sbr.rel (%p361) target = $region60
        $region59: #{tpu_custom_call.1} parent=55 // pred_region
          %365 = dma.done %s357, 128
        $region60: #{tpu_custom_call.1} parent=55 // pred_fallthru
          _
        // Predicated region
        $region61: #{tpu_custom_call.1} parent=55 // pred_check
          %p366 = pneg %p70
        $region62: #{tpu_custom_call.1} parent=55 // pred_check_branch
          %368 = sbr.rel (%p366) target = $region64
        $region63: #{tpu_custom_call.1} parent=55 // pred_region
          %370 = dma.done [#allocation6], 512
        $region64: #{tpu_custom_call.1} parent=55 // pred_fallthru
          _
        // Predicated region
        $region65: #{tpu_custom_call.1} parent=55 // pred_check
          %p371 = pneg %p91
        $region66: #{tpu_custom_call.1} parent=55 // pred_check_branch
          %373 = sbr.rel (%p371) target = $region68
        $region67: #{tpu_custom_call.1} parent=55 // pred_region
          %375 = dma.done [#allocation6], 512
        $region68: #{tpu_custom_call.1} parent=55 // pred_fallthru
          _
        // Predicated region
        $region69: #{tpu_custom_call.1} parent=55 // pred_check
          %p376 = pneg %p112
        $region70: #{tpu_custom_call.1} parent=55 // pred_check_branch
          %378 = sbr.rel (%p376) target = $region72
        $region71: #{tpu_custom_call.1} parent=55 // pred_region
          %380 = dma.done [#allocation9], 512
        $region72: #{tpu_custom_call.1} parent=55 // pred_fallthru
          _
        // Predicated region
        $region73: #{tpu_custom_call.1} parent=55 // pred_check
          %p381 = pneg %p196
        $region74: #{tpu_custom_call.1} parent=55 // pred_check_branch
          %383 = sbr.rel (%p381) target = $region76
        $region75: #{tpu_custom_call.1} parent=55 // pred_region
          %385 = dma.done [#allocation9], 512
        $region76: #{tpu_custom_call.1} parent=55 // pred_fallthru
          _
        %s386 = sand.u32 %s36, 1
        %s387 = scalar_lea.sflag [#allocation3], %s386
        %s388 = sand.u32 %s36, 1
        %s389 = smul.addr %s388, 8
        %s390 = scalar_lea.vmem [#allocation2], %s389
        %p391 = pneg %p49
        %p392 = pneg %p46
        %p393 = pneg %p70
        %p394 = pneg %p67
        %p395 = pneg %p91
        %p396 = pneg %p88
        %p397 = pneg %p112
        %p398 = pneg %p109
        %p399 = pneg %p133
        %p400 = pneg %p130
        %p401 = pneg %p154
        %p402 = pneg %p151
        %p403 = pneg %p175
        %p404 = pneg %p172
        %p405 = pneg %p196
        %p406 = pneg %p193
        %p407 = pneg %p217
        %p408 = pneg %p214
        %p409 = pneg %p243
        %p410 = pneg %p240
        %s411 = sand.u32 %s230, 1
        %s412 = scalar_lea.sflag [#allocation4], %s411
        %s413 = sand.u32 %s230, 1
        %s414 = smul.addr %s413, 8
        %s415 = scalar_lea.vmem [#allocation11], %s414
        %v416 = vld [vmem:[%s360] sm:$0xff]
        %v417 = vld [vmem:[#allocation5] sm:$0xff]
        %v418 = vld [vmem:[#allocation5 + $0x8] sm:$0xff]
        %v419 = vld [vmem:[#allocation5 + $0x10] sm:$0xff]
        %v420 = vld [vmem:[#allocation5 + $0x18] sm:$0xff]
        %v421 = vld [vmem:[%s4] sm:$0x1]
        %v423 = vperm.slane %v421, 0
        %vm425 = vcmask 261120
        %v427 = vsel %vm425, %v416, 0
        %429 = vmatpush.msra.mxu0 0.0
        %430 = vmatpush.msra.mxu0 0.0
        %431 = vmatpush.msra.mxu0 0.0
        %432 = vmatpush.msra.mxu0 0.0
        %433 = vmatpush.msra.mxu0 0.0
        %434 = vmatpush.msra.mxu0 0.0
        %435 = vmatpush.msra.mxu0 0.0
        %436 = vmatpush.msra.mxu0 0.0
        %437 = vmatpush.msra.mxu0 0.0
        %438 = vmatpush.msra.mxu0 0.0
        %439 = vmatpush.msra.mxu0 0.0
        %440 = vmatpush.msra.mxu0 0.0
        %441 = vmatpush.msra.mxu0 %v420
        %442 = vmatpush.msra.mxu0 %v419
        %443 = vmatpush.msra.mxu0 %v418
        %444 = vmatpush.msra.mxu0 %v417
        %445 = vmatmul.f32.gmra.mxu0 %v427
        %v446 = vpop.f32.mrf.mxu0
        %v447 = vadd.f32 %v423, %v446
        %448 = vdwg.mxu0
        %v449 = vld [vmem:[#allocation7] sm:$0xff]
        %v450 = vld [vmem:[#allocation7 + $0x8] sm:$0xff]
        %v451 = vld [vmem:[#allocation7 + $0x10] sm:$0xff]
        %v452 = vld [vmem:[#allocation7 + $0x18] sm:$0xff]
        %v453 = vld [vmem:[%s5] sm:$0x1]
        %v455 = vperm.slane %v453, 0
        %457 = vmatpush.msra.mxu0 0.0
        %458 = vmatpush.msra.mxu0 0.0
        %459 = vmatpush.msra.mxu0 0.0
        %460 = vmatpush.msra.mxu0 0.0
        %461 = vmatpush.msra.mxu0 0.0
        %462 = vmatpush.msra.mxu0 0.0
        %463 = vmatpush.msra.mxu0 0.0
        %464 = vmatpush.msra.mxu0 0.0
        %465 = vmatpush.msra.mxu0 0.0
        %466 = vmatpush.msra.mxu0 0.0
        %467 = vmatpush.msra.mxu0 0.0
        %468 = vmatpush.msra.mxu0 0.0
        %469 = vmatpush.msra.mxu0 %v452
        %470 = vmatpush.msra.mxu0 %v451
        %471 = vmatpush.msra.mxu0 %v450
        %472 = vmatpush.msra.mxu0 %v449
        %473 = vmatmul.f32.gmra.mxu0 %v427
        %v474 = vpop.f32.mrf.mxu0
        %v475 = vadd.f32 %v455, %v474
        %476 = vdwg.mxu0
        %v477 = vld [vmem:[#allocation8] sm:$0xff]
        %v478 = vld [vmem:[#allocation8 + $0x8] sm:$0xff]
        %v479 = vld [vmem:[#allocation8 + $0x10] sm:$0xff]
        %v480 = vld [vmem:[#allocation8 + $0x18] sm:$0xff]
        %v481 = vld [vmem:[%s6] sm:$0x1]
        %v483 = vperm.slane %v481, 0
        %485 = vmatpush.msra.mxu0 0.0
        %486 = vmatpush.msra.mxu0 0.0
        %487 = vmatpush.msra.mxu0 0.0
        %488 = vmatpush.msra.mxu0 0.0
        %489 = vmatpush.msra.mxu0 0.0
        %490 = vmatpush.msra.mxu0 0.0
        %491 = vmatpush.msra.mxu0 0.0
        %492 = vmatpush.msra.mxu0 0.0
        %493 = vmatpush.msra.mxu0 0.0
        %494 = vmatpush.msra.mxu0 0.0
        %495 = vmatpush.msra.mxu0 0.0
        %496 = vmatpush.msra.mxu0 0.0
        %497 = vmatpush.msra.mxu0 %v480
        %498 = vmatpush.msra.mxu0 %v479
        %499 = vmatpush.msra.mxu0 %v478
        %500 = vmatpush.msra.mxu0 %v477
        %501 = vmatmul.f32.gmra.mxu0 %v427
        %v502 = vpop.f32.mrf.mxu0
        %v503 = vadd.f32 %v483, %v502
        %504 = vdwg.mxu0
        %vm505 = vcmask 64512
        %v507 = vsel %vm505, %v447, 0
        %v510 = vsel %vm505, %v475, 0
        %512 = vmatpush.xpose.msra.mxu0 0.0
        %513 = vmatpush.xpose.msra.mxu0 0.0
        %514 = vmatpush.xpose.msra.mxu0 0.0
        %515 = vmatpush.xpose.msra.mxu0 0.0
        %516 = vmatpush.xpose.msra.mxu0 0.0
        %517 = vmatpush.xpose.msra.mxu0 0.0
        %518 = vmatpush.xpose.msra.mxu0 0.0
        %519 = vmatpush.xpose.msra.mxu0 0.0
        %520 = vmatpush.xpose.msra.mxu0 0.0
        %521 = vmatpush.xpose.msra.mxu0 0.0
        %522 = vmatpush.xpose.msra.mxu0 0.0
        %523 = vmatpush.xpose.msra.mxu0 0.0
        %524 = vmatpush.xpose.msra.mxu0 0.0
        %525 = vmatpush.xpose.msra.mxu0 0.0
        %526 = vmatpush.xpose.msra.mxu0 0.0
        %527 = vmatpush.xpose.msra.mxu0 %v510
        %528 = vmatmul.f32.gmra.mxu0 %v507
        %v529 = vpop.f32.mrf.mxu0
        %v530 = vadd.f32 0.0, %v529
        %531 = vdwg.mxu0
        %v532 = vmul.f32 %v530, 0.35355338
        %v533 = vsel %vm505, %v532, -inf
        %534 = vmax.xlane.f32.xlu0 %v533
        %v535 = vpop.xlane.xlu0 %534
        %v536 = vsub.f32 %v532, %v535
        %v537 = vmul.f32 %v536, 1.442695
        %v538 = vpow.pop %v537
        %v539 = vsel %vm505, %v538, 0.0
        %540 = vadd.xlane.f32.xlu0 %v539
        %v541 = vpop.xlane.xlu0 %540
        %v542 = vrcp.pop %v541
        %v543 = vmul.f32 %v538, %v542
        %v545 = vsel %vm505, %v543, 0
        %547 = vmatpush.msra.mxu0 0.0
        %548 = vmatpush.msra.mxu0 0.0
        %549 = vmatpush.msra.mxu0 0.0
        %550 = vmatpush.msra.mxu0 0.0
        %551 = vmatpush.msra.mxu0 0.0
        %552 = vmatpush.msra.mxu0 0.0
        %553 = vmatpush.msra.mxu0 0.0
        %554 = vmatpush.msra.mxu0 0.0
        %555 = vmatpush.msra.mxu0 0.0
        %556 = vmatpush.msra.mxu0 0.0
        %557 = vmatpush.msra.mxu0 0.0
        %558 = vmatpush.msra.mxu0 0.0
        %559 = vmatpush.msra.mxu0 0.0
        %560 = vmatpush.msra.mxu0 0.0
        %561 = vmatpush.msra.mxu0 0.0
        %562 = vmatpush.msra.mxu0 %v503
        %563 = vmatmul.f32.gmra.mxu0 %v545
        %v564 = vpop.f32.mrf.mxu0
        %v565 = vadd.f32 0.0, %v564
        %566 = vdwg.mxu0
        %v567 = vld [vmem:[#allocation10] sm:$0xff]
        %568 = vrot.lane.b32.xlu0 %v447, 120
        %v569 = vpop.permute.xlu0 %568
        %570 = vrot.lane.b32.xlu0 %v475, 120
        %v571 = vpop.permute.xlu0 %570
        %v572 = vsel %vm505, %v569, 0
        %v574 = vsel %vm505, %v571, 0
        %576 = vmatpush.xpose.msra.mxu0 0.0
        %577 = vmatpush.xpose.msra.mxu0 0.0
        %578 = vmatpush.xpose.msra.mxu0 0.0
        %579 = vmatpush.xpose.msra.mxu0 0.0
        %580 = vmatpush.xpose.msra.mxu0 0.0
        %581 = vmatpush.xpose.msra.mxu0 0.0
        %582 = vmatpush.xpose.msra.mxu0 0.0
        %583 = vmatpush.xpose.msra.mxu0 0.0
        %584 = vmatpush.xpose.msra.mxu0 0.0
        %585 = vmatpush.xpose.msra.mxu0 0.0
        %586 = vmatpush.xpose.msra.mxu0 0.0
        %587 = vmatpush.xpose.msra.mxu0 0.0
        %588 = vmatpush.xpose.msra.mxu0 0.0
        %589 = vmatpush.xpose.msra.mxu0 0.0
        %590 = vmatpush.xpose.msra.mxu0 0.0
        %591 = vmatpush.xpose.msra.mxu0 %v574
        %592 = vmatmul.f32.gmra.mxu0 %v572
        %v593 = vpop.f32.mrf.mxu0
        %v594 = vadd.f32 0.0, %v593
        %595 = vdwg.mxu0
        %v596 = vmul.f32 %v594, 0.35355338
        %v597 = vsel %vm505, %v596, -inf
        %598 = vmax.xlane.f32.xlu0 %v597
        %v599 = vpop.xlane.xlu0 %598
        %v600 = vsub.f32 %v596, %v599
        %v601 = vmul.f32 %v600, 1.442695
        %v602 = vpow.pop %v601
        %v603 = vsel %vm505, %v602, 0.0
        %604 = vadd.xlane.f32.xlu0 %v603
        %v605 = vpop.xlane.xlu0 %604
        %v606 = vrcp.pop %v605
        %v607 = vmul.f32 %v602, %v606
        %609 = vrot.lane.b32.xlu0 %v503, 120
        %v610 = vpop.permute.xlu0 %609
        %v613 = vsel %vm505, %v607, 0
        %615 = vmatpush.msra.mxu0 0.0
        %616 = vmatpush.msra.mxu0 0.0
        %617 = vmatpush.msra.mxu0 0.0
        %618 = vmatpush.msra.mxu0 0.0
        %619 = vmatpush.msra.mxu0 0.0
        %620 = vmatpush.msra.mxu0 0.0
        %621 = vmatpush.msra.mxu0 0.0
        %622 = vmatpush.msra.mxu0 0.0
        %623 = vmatpush.msra.mxu0 0.0
        %624 = vmatpush.msra.mxu0 0.0
        %625 = vmatpush.msra.mxu0 0.0
        %626 = vmatpush.msra.mxu0 0.0
        %627 = vmatpush.msra.mxu0 0.0
        %628 = vmatpush.msra.mxu0 0.0
        %629 = vmatpush.msra.mxu0 0.0
        %630 = vmatpush.msra.mxu0 %v610
        %631 = vmatmul.f32.gmra.mxu0 %v613
        %v632 = vpop.f32.mrf.mxu0
        %v633 = vadd.f32 0.0, %v632
        %634 = vdwg.mxu0
        %v635 = vld [vmem:[#allocation10 + $0x8] sm:$0xff]
        %v637 = vsel %vm505, %v633, 0
        %639 = vmatpush.msra.mxu0 0.0
        %640 = vmatpush.msra.mxu0 0.0
        %641 = vmatpush.msra.mxu0 0.0
        %642 = vmatpush.msra.mxu0 0.0
        %643 = vmatpush.msra.mxu0 0.0
        %644 = vmatpush.msra.mxu0 0.0
        %645 = vmatpush.msra.mxu0 0.0
        %646 = vmatpush.msra.mxu0 0.0
        %647 = vmatpush.msra.mxu0 0.0
        %648 = vmatpush.msra.mxu0 0.0
        %649 = vmatpush.msra.mxu0 0.0
        %650 = vmatpush.msra.mxu0 0.0
        %651 = vmatpush.msra.mxu0 0.0
        %652 = vmatpush.msra.mxu0 0.0
        %653 = vmatpush.msra.mxu0 0.0
        %654 = vmatpush.msra.mxu0 %v635
        %655 = vmatmul.f32.gmra.mxu0 %v637
        %v656 = vpop.f32.mrf.mxu0
        %v657 = vadd.f32 0.0, %v656
        %658 = vdwg.mxu0
        %v660 = vsel %vm505, %v565, 0
        %662 = vmatpush.msra.mxu0 0.0
        %663 = vmatpush.msra.mxu0 0.0
        %664 = vmatpush.msra.mxu0 0.0
        %665 = vmatpush.msra.mxu0 0.0
        %666 = vmatpush.msra.mxu0 0.0
        %667 = vmatpush.msra.mxu0 0.0
        %668 = vmatpush.msra.mxu0 0.0
        %669 = vmatpush.msra.mxu0 0.0
        %670 = vmatpush.msra.mxu0 0.0
        %671 = vmatpush.msra.mxu0 0.0
        %672 = vmatpush.msra.mxu0 0.0
        %673 = vmatpush.msra.mxu0 0.0
        %674 = vmatpush.msra.mxu0 0.0
        %675 = vmatpush.msra.mxu0 0.0
        %676 = vmatpush.msra.mxu0 0.0
        %677 = vmatpush.msra.mxu0 %v567
        %678 = vmatmul.f32.gmra.mxu0 %v660
        %v679 = vpop.f32.mrf.mxu0
        %v680 = vadd.f32 %v657, %v679
        %681 = vdwg.mxu0
        %682 = vrot.lane.b32.xlu0 %v447, 112
        %v683 = vpop.permute.xlu0 %682
        %684 = vrot.lane.b32.xlu0 %v475, 112
        %v685 = vpop.permute.xlu0 %684
        %v686 = vsel %vm505, %v683, 0
        %v688 = vsel %vm505, %v685, 0
        %690 = vmatpush.xpose.msra.mxu0 0.0
        %691 = vmatpush.xpose.msra.mxu0 0.0
        %692 = vmatpush.xpose.msra.mxu0 0.0
        %693 = vmatpush.xpose.msra.mxu0 0.0
        %694 = vmatpush.xpose.msra.mxu0 0.0
        %695 = vmatpush.xpose.msra.mxu0 0.0
        %696 = vmatpush.xpose.msra.mxu0 0.0
        %697 = vmatpush.xpose.msra.mxu0 0.0
        %698 = vmatpush.xpose.msra.mxu0 0.0
        %699 = vmatpush.xpose.msra.mxu0 0.0
        %700 = vmatpush.xpose.msra.mxu0 0.0
        %701 = vmatpush.xpose.msra.mxu0 0.0
        %702 = vmatpush.xpose.msra.mxu0 0.0
        %703 = vmatpush.xpose.msra.mxu0 0.0
        %704 = vmatpush.xpose.msra.mxu0 0.0
        %705 = vmatpush.xpose.msra.mxu0 %v688
        %706 = vmatmul.f32.gmra.mxu0 %v686
        %v707 = vpop.f32.mrf.mxu0
        %v708 = vadd.f32 0.0, %v707
        %709 = vdwg.mxu0
        %v710 = vmul.f32 %v708, 0.35355338
        %v711 = vsel %vm505, %v710, -inf
        %712 = vmax.xlane.f32.xlu0 %v711
        %v713 = vpop.xlane.xlu0 %712
        %v714 = vsub.f32 %v710, %v713
        %v715 = vmul.f32 %v714, 1.442695
        %v716 = vpow.pop %v715
        %v717 = vsel %vm505, %v716, 0.0
        %718 = vadd.xlane.f32.xlu0 %v717
        %v719 = vpop.xlane.xlu0 %718
        %v720 = vrcp.pop %v719
        %v721 = vmul.f32 %v716, %v720
        %722 = vrot.lane.b32.xlu0 %v503, 112
        %v723 = vpop.permute.xlu0 %722
        %v726 = vsel %vm505, %v721, 0
        %728 = vmatpush.msra.mxu0 0.0
        %729 = vmatpush.msra.mxu0 0.0
        %730 = vmatpush.msra.mxu0 0.0
        %731 = vmatpush.msra.mxu0 0.0
        %732 = vmatpush.msra.mxu0 0.0
        %733 = vmatpush.msra.mxu0 0.0
        %734 = vmatpush.msra.mxu0 0.0
        %735 = vmatpush.msra.mxu0 0.0
        %736 = vmatpush.msra.mxu0 0.0
        %737 = vmatpush.msra.mxu0 0.0
        %738 = vmatpush.msra.mxu0 0.0
        %739 = vmatpush.msra.mxu0 0.0
        %740 = vmatpush.msra.mxu0 0.0
        %741 = vmatpush.msra.mxu0 0.0
        %742 = vmatpush.msra.mxu0 0.0
        %743 = vmatpush.msra.mxu0 %v723
        %744 = vmatmul.f32.gmra.mxu0 %v726
        %v745 = vpop.f32.mrf.mxu0
        %v746 = vadd.f32 0.0, %v745
        %747 = vdwg.mxu0
        %v748 = vld [vmem:[#allocation10 + $0x10] sm:$0xff]
        %v750 = vsel %vm505, %v746, 0
        %752 = vmatpush.msra.mxu0 0.0
        %753 = vmatpush.msra.mxu0 0.0
        %754 = vmatpush.msra.mxu0 0.0
        %755 = vmatpush.msra.mxu0 0.0
        %756 = vmatpush.msra.mxu0 0.0
        %757 = vmatpush.msra.mxu0 0.0
        %758 = vmatpush.msra.mxu0 0.0
        %759 = vmatpush.msra.mxu0 0.0
        %760 = vmatpush.msra.mxu0 0.0
        %761 = vmatpush.msra.mxu0 0.0
        %762 = vmatpush.msra.mxu0 0.0
        %763 = vmatpush.msra.mxu0 0.0
        %764 = vmatpush.msra.mxu0 0.0
        %765 = vmatpush.msra.mxu0 0.0
        %766 = vmatpush.msra.mxu0 0.0
        %767 = vmatpush.msra.mxu0 %v748
        %768 = vmatmul.f32.gmra.mxu0 %v750
        %v769 = vpop.f32.mrf.mxu0
        %v770 = vadd.f32 0.0, %v769
        %771 = vdwg.mxu0
        %v772 = vadd.f32 %v680, %v770
        %773 = vrot.lane.b32.xlu0 %v447, 104
        %v774 = vpop.permute.xlu0 %773
        %775 = vrot.lane.b32.xlu0 %v475, 104
        %v776 = vpop.permute.xlu0 %775
        %v777 = vsel %vm505, %v774, 0
        %v779 = vsel %vm505, %v776, 0
        %781 = vmatpush.xpose.msra.mxu0 0.0
        %782 = vmatpush.xpose.msra.mxu0 0.0
        %783 = vmatpush.xpose.msra.mxu0 0.0
        %784 = vmatpush.xpose.msra.mxu0 0.0
        %785 = vmatpush.xpose.msra.mxu0 0.0
        %786 = vmatpush.xpose.msra.mxu0 0.0
        %787 = vmatpush.xpose.msra.mxu0 0.0
        %788 = vmatpush.xpose.msra.mxu0 0.0
        %789 = vmatpush.xpose.msra.mxu0 0.0
        %790 = vmatpush.xpose.msra.mxu0 0.0
        %791 = vmatpush.xpose.msra.mxu0 0.0
        %792 = vmatpush.xpose.msra.mxu0 0.0
        %793 = vmatpush.xpose.msra.mxu0 0.0
        %794 = vmatpush.xpose.msra.mxu0 0.0
        %795 = vmatpush.xpose.msra.mxu0 0.0
        %796 = vmatpush.xpose.msra.mxu0 %v779
        %797 = vmatmul.f32.gmra.mxu0 %v777
        %v798 = vpop.f32.mrf.mxu0
        %v799 = vadd.f32 0.0, %v798
        %800 = vdwg.mxu0
        %v801 = vmul.f32 %v799, 0.35355338
        %v802 = vsel %vm505, %v801, -inf
        %803 = vmax.xlane.f32.xlu0 %v802
        %v804 = vpop.xlane.xlu0 %803
        %v805 = vsub.f32 %v801, %v804
        %v806 = vmul.f32 %v805, 1.442695
        %v807 = vpow.pop %v806
        %v808 = vsel %vm505, %v807, 0.0
        %809 = vadd.xlane.f32.xlu0 %v808
        %v810 = vpop.xlane.xlu0 %809
        %v811 = vrcp.pop %v810
        %v812 = vmul.f32 %v807, %v811
        %813 = vrot.lane.b32.xlu0 %v503, 104
        %v814 = vpop.permute.xlu0 %813
        %v817 = vsel %vm505, %v812, 0
        %819 = vmatpush.msra.mxu0 0.0
        %820 = vmatpush.msra.mxu0 0.0
        %821 = vmatpush.msra.mxu0 0.0
        %822 = vmatpush.msra.mxu0 0.0
        %823 = vmatpush.msra.mxu0 0.0
        %824 = vmatpush.msra.mxu0 0.0
        %825 = vmatpush.msra.mxu0 0.0
        %826 = vmatpush.msra.mxu0 0.0
        %827 = vmatpush.msra.mxu0 0.0
        %828 = vmatpush.msra.mxu0 0.0
        %829 = vmatpush.msra.mxu0 0.0
        %830 = vmatpush.msra.mxu0 0.0
        %831 = vmatpush.msra.mxu0 0.0
        %832 = vmatpush.msra.mxu0 0.0
        %833 = vmatpush.msra.mxu0 0.0
        %834 = vmatpush.msra.mxu0 %v814
        %835 = vmatmul.f32.gmra.mxu0 %v817
        %v836 = vpop.f32.mrf.mxu0
        %v837 = vadd.f32 0.0, %v836
        %838 = vdwg.mxu0
        %v839 = vld [vmem:[#allocation10 + $0x18] sm:$0xff]
        %v841 = vsel %vm505, %v837, 0
        %843 = vmatpush.msra.mxu0 0.0
        %844 = vmatpush.msra.mxu0 0.0
        %845 = vmatpush.msra.mxu0 0.0
        %846 = vmatpush.msra.mxu0 0.0
        %847 = vmatpush.msra.mxu0 0.0
        %848 = vmatpush.msra.mxu0 0.0
        %849 = vmatpush.msra.mxu0 0.0
        %850 = vmatpush.msra.mxu0 0.0
        %851 = vmatpush.msra.mxu0 0.0
        %852 = vmatpush.msra.mxu0 0.0
        %853 = vmatpush.msra.mxu0 0.0
        %854 = vmatpush.msra.mxu0 0.0
        %855 = vmatpush.msra.mxu0 0.0
        %856 = vmatpush.msra.mxu0 0.0
        %857 = vmatpush.msra.mxu0 0.0
        %858 = vmatpush.msra.mxu0 %v839
        %859 = vmatmul.f32.gmra.mxu0 %v841
        %v860 = vpop.f32.mrf.mxu0
        %v861 = vadd.f32 0.0, %v860
        %862 = vdwg.mxu0
        %v863 = vadd.f32 %v772, %v861
        %v864 = vld [vmem:[%s8] sm:$0x1]
        %v866 = vperm.slane %v864, 0
        %v868 = vadd.f32 %v863, %v866
        %869 = vst.msk [vmem:[%s415] sm:$0xff] %vm425, %v868
        %s870 = sand.u32 %s230, 1
        %s871 = scalar_lea.sflag [#allocation4], %s870
        %s872 = sand.u32 %s230, 1
        %s873 = smul.addr %s872, 8
        %s874 = scalar_lea.vmem [#allocation11], %s873
        // Predicated region
        $region77: #{tpu_custom_call.1} parent=55 // pred_check
          %p875 = pneg %p240
        $region78: #{tpu_custom_call.1} parent=55 // pred_check_branch
          %877 = sbr.rel (%p875) target = $region80
        $region79: #{tpu_custom_call.1} parent=55 // pred_region
          %879 = vsyncadd %s871, 0
          %s880 = smul.addr %s28, 8
          %s881 = scalar_lea.hbm %s9, %s880
          %s883 = sshll.u32 %s874, 4
          %s884 = int_to_ptr.vmem [resolvable:$true] %s883
          %s885 = sshll.u32 %s881, 4
          %s886 = int_to_ptr.hbm [resolvable:$true] %s885
          %888 = dma.vmem_to_hbm [thread:$0]  %s884, 128, %s886, %s871
        $region80: #{tpu_custom_call.1} parent=55 // pred_fallthru
          _
      $region56: #{tpu_custom_call.1} parent=5 // pred_fallthru
        _
      %p889 = scmp.le.s32.totalorder 2, %s23
      // Predicated region
      $region81: #{tpu_custom_call.1} parent=5 // pred_check
        %p890 = pneg %p889
      $region82: #{tpu_custom_call.1} parent=5 // pred_check_branch
        %892 = sbr.rel (%p890) target = $region84
      $region83: #{tpu_custom_call.1} parent=5 // pred_region
        %s893 = ssub.s32 %s23, 2
        // Predicated region
        $region85: #{tpu_custom_call.1} parent=83 // pred_check
          %p894 = pneg %p246
        $region86: #{tpu_custom_call.1} parent=83 // pred_check_branch
          %896 = sbr.rel (%p894) target = $region88
        $region87: #{tpu_custom_call.1} parent=83 // pred_region
          %s897 = sand.u32 %s231, 1
          %s898 = scalar_lea.sflag [#allocation4], %s897
          %s899 = sand.u32 %s231, 1
          %s900 = smul.addr %s899, 8
          %s901 = scalar_lea.vmem [#allocation11], %s900
          %903 = dma.done %s898, 128
        $region88: #{tpu_custom_call.1} parent=83 // pred_fallthru
          _
      $region84: #{tpu_custom_call.1} parent=5 // pred_fallthru
        _
    $region6: #{tpu_custom_call.1} parent=1 // loop_footer
      %s27 = sadd.s32 1, %s23
    $region7: #{tpu_custom_call.1} parent=1 // loop_footer_branch
      %22 = sbr.rel target = $region3
    $region8: #{tpu_custom_call.1} parent=1 // loop_exit
      _
    %904 = vsyncpa [#allocation3], 1
    %s905 = scalar_lea.sflag [#allocation3], 1
    %906 = vsyncpa %s905, 1
    %907 = vsyncpa [#allocation6], 1
    %908 = vsyncpa [#allocation9], 1
    %909 = vsyncpa [#allocation4], 1
    %s910 = scalar_lea.sflag [#allocation4], 1
    %911 = vsyncpa %s910, 1

</llo_original>
